<compile_context>
chip_gen: v7x
topology: tpu7x:2x2x1
jax: 0.10.0
libtpu: 0.0.40
codegen_flags: <defaults>
</compile_context>

<pallas_src>
import functools

import jax
import jax.numpy as jnp
from jax.experimental import pallas as pl
from jax.experimental.pallas import tpu as pltpu


def _round_up(x, m):
    return ((x + m - 1) // m) * m


def _choose_tile(n, tile_m):
    """8-aligned batch tile; keep >=2 grid steps when the batch allows (v7x megacore)."""
    tm = min(_round_up(tile_m, 8), _round_up(max(1, (n + 1) // 2), 8))
    return max(8, tm)


def _prediction_kernel(x_ref, w1_ref, b1_ref, wm1_ref, bm1_ref,
                       wm2_ref, bm2_ref, w2_ref, b2_ref, o_ref):
    """Fused 4-layer MLP forward for one batch tile (everything resident in VMEM).

    Matmul operands are bf16 (MXU-native) with f32 accumulation; biases, residual,
    final lane-reduction and sigmoid are f32.
    """
    x = x_ref[...].astype(jnp.bfloat16)

    # out_mlp1 + ReLU      (MXU: [tm, K] x [K, H], f32 accumulate)
    hid = jnp.dot(x, w1_ref[...], preferred_element_type=jnp.float32) + b1_ref[...]
    hid = jnp.maximum(hid, 0.0)

    # mid_mlp1 + ReLU      (MXU: [tm, H] x [H, M])
    mid = jnp.dot(hid.astype(jnp.bfloat16), wm1_ref[...],
                  preferred_element_type=jnp.float32) + bm1_ref[...]
    mid = jnp.maximum(mid, 0.0)

    # mid_mlp2 + ReLU      (MXU: [tm, M] x [M, H])
    mid = jnp.dot(mid.astype(jnp.bfloat16), wm2_ref[...],
                  preferred_element_type=jnp.float32) + bm2_ref[...]
    mid = jnp.maximum(mid, 0.0)

    # residual connection (f32)
    hid = hid + mid

    # out_mlp2 + sigmoid.  The 256->1 matvec stays off the MXU: VPU multiply against
    # w2 passed as a (1, H) row + XLU lane reduction; b2 is a scalar read from SMEM.
    logit = jnp.sum(hid * w2_ref[...], axis=-1, keepdims=True) + b2_ref[0]
    o_ref[...] = jax.nn.sigmoid(logit).astype(o_ref.dtype)


@functools.partial(jax.jit, static_argnames=("tile_m",))
def prediction_forward(features, params, tile_m=1024):
    """features: [N, in_feature] float32. params: dict of pre-transposed weights/biases."""
    n, in_feature = features.shape
    hid_units = params["w1"].shape[1]
    mid_units = params["wm1"].shape[1]

    # bf16 matmul weights (no-op if caller already supplies bf16); biases stay f32.
    w1 = params["w1"].astype(jnp.bfloat16)
    wm1 = params["wm1"].astype(jnp.bfloat16)
    wm2 = params["wm2"].astype(jnp.bfloat16)
    w2_row = params["w2"].reshape(1, hid_units).astype(jnp.float32)  # VPU reduce row
    b2 = params["b2"].reshape(1).astype(jnp.float32)                 # scalar -> SMEM

    # No wrapper-side padding: ragged last batch block handled by Pallas
    # (row-independent math; out-of-bounds output rows are masked on store).
    tm = _choose_tile(n, tile_m)
    grid = (pl.cdiv(n, tm),)

    # Weights/biases are small -> whole-tensor blocks with a constant index map
    # (stay resident in VMEM, no re-DMA across grid steps).
    rep = lambda shape: pl.BlockSpec(shape, lambda i: (0, 0))

    out = pl.pallas_call(
        _prediction_kernel,
        out_shape=jax.ShapeDtypeStruct((n, 1), jnp.float32),
        grid=grid,
        in_specs=[
            pl.BlockSpec((tm, in_feature), lambda i: (i, 0)),   # features tile (f32)
            rep((in_feature, hid_units)),    # w1  (bf16, K = 69 unpadded)
            rep((1, hid_units)),             # b1  (f32)
            rep((hid_units, mid_units)),     # wm1 (bf16)
            rep((1, mid_units)),             # bm1 (f32)
            rep((mid_units, hid_units)),     # wm2 (bf16)
            rep((1, hid_units)),             # bm2 (f32)
            rep((1, hid_units)),             # w2 as a (1, H) f32 row
            pl.BlockSpec(memory_space=pltpu.MemorySpace.SMEM),  # b2 scalar
        ],
        out_specs=pl.BlockSpec((tm, 1), lambda i: (i, 0)),
        compiler_params=pltpu.CompilerParams(
            dimension_semantics=("parallel",)),
    )(features, w1, params["b1"],
      wm1, params["bm1"],
      wm2, params["bm2"],
      w2_row, b2)

    return out


def init_params(key, in_feature=69, hid_units=256, contract=1):
    """Deterministic synthetic init (shapes match nn.Linear weights, stored transposed)."""
    mid_units = hid_units // contract
    keys = jax.random.split(key, 8)

    def lin(kw, kb, fan_in, fan_out):
        bound = 1.0 / jnp.sqrt(fan_in)
        w = jax.random.uniform(kw, (fan_in, fan_out), jnp.float32, -bound, bound)
        b = jax.random.uniform(kb, (1, fan_out), jnp.float32, -bound, bound)
        return w, b

    w1, b1 = lin(keys[0], keys[1], in_feature, hid_units)
    wm1, bm1 = lin(keys[2], keys[3], hid_units, mid_units)
    wm2, bm2 = lin(keys[4], keys[5], mid_units, hid_units)
    w2, b2 = lin(keys[6], keys[7], hid_units, 1)
    return dict(w1=w1, b1=b1, wm1=wm1, bm1=bm1, wm2=wm2, bm2=bm2, w2=w2, b2=b2)


def prediction_ref(features, p):
    """Pure-JAX f32 reference of the PyTorch forward (NaN-print side effects omitted)."""
    hid = jax.nn.relu(features @ p["w1"] + p["b1"])
    mid = jax.nn.relu(hid @ p["wm1"] + p["bm1"])
    mid = jax.nn.relu(mid @ p["wm2"] + p["bm2"])
    hid = hid + mid
    return jax.nn.sigmoid(hid @ p["w2"] + p["b2"])


if __name__ == "__main__":
    key = jax.random.PRNGKey(0)
    k_feat, k_param, k_feat2 = jax.random.split(key, 3)

    IN_FEATURE, HID_UNITS = 69, 256
    params = init_params(k_param, in_feature=IN_FEATURE, hid_units=HID_UNITS, contract=1)

    # Small demo batch (two 8-row grid steps).
    N = 16
    features = jax.random.normal(k_feat, (N, IN_FEATURE), dtype=jnp.float32)
    out = jax.block_until_ready(prediction_forward(features, params))
    ref = prediction_ref(features, params)
    assert out.shape == (N, 1)
    assert jnp.allclose(out, ref, atol=1e-2, rtol=1e-2), "mismatch vs reference (N=16)"

    # Ragged batch: >1 grid step + masked edge block (no wrapper-side padding).
    N2 = 300
    features2 = jax.random.normal(k_feat2, (N2, IN_FEATURE), dtype=jnp.float32)
    out2 = jax.block_until_ready(prediction_forward(features2, params))
    ref2 = prediction_ref(features2, params)
    assert out2.shape == (N2, 1)
    assert jnp.allclose(out2, ref2, atol=1e-2, rtol=1e-2), "mismatch vs reference (N=300)"

    print("KERNEL_OK")
</pallas_src>

<mosaic_0001>
module attributes {stable_mosaic.version = 11 : i64} {
  func.func @_prediction_kernel(%arg0: i32, %arg1: memref<8x69xf32, #tpu.memory_space<vmem>>, %arg2: memref<69x256xbf16, #tpu.memory_space<vmem>>, %arg3: memref<1x256xf32, #tpu.memory_space<vmem>>, %arg4: memref<256x256xbf16, #tpu.memory_space<vmem>>, %arg5: memref<1x256xf32, #tpu.memory_space<vmem>>, %arg6: memref<256x256xbf16, #tpu.memory_space<vmem>>, %arg7: memref<1x256xf32, #tpu.memory_space<vmem>>, %arg8: memref<1x256xf32, #tpu.memory_space<vmem>>, %arg9: memref<1xf32, #tpu.memory_space<smem>>, %arg10: memref<8x1xf32, #tpu.memory_space<vmem>>) attributes {dimension_semantics = [#tpu.dimension_semantics<parallel>], iteration_bounds = array<i64: 2>, scalar_prefetch = 0 : i64, scratch_operands = 0 : i64, tpu.core_type = #tpu.core_type<tc>, window_params = [{transform_indices = @transform_0, window_bounds = array<i64: 8, 69>}, {pipeline_mode = #tpu.pipeline_mode<synchronous>, transform_indices = @transform_1, window_bounds = array<i64: 69, 256>}, {pipeline_mode = #tpu.pipeline_mode<synchronous>, transform_indices = @transform_2, window_bounds = array<i64: 1, 256>}, {pipeline_mode = #tpu.pipeline_mode<synchronous>, transform_indices = @transform_3, window_bounds = array<i64: 256, 256>}, {pipeline_mode = #tpu.pipeline_mode<synchronous>, transform_indices = @transform_4, window_bounds = array<i64: 1, 256>}, {pipeline_mode = #tpu.pipeline_mode<synchronous>, transform_indices = @transform_5, window_bounds = array<i64: 256, 256>}, {pipeline_mode = #tpu.pipeline_mode<synchronous>, transform_indices = @transform_6, window_bounds = array<i64: 1, 256>}, {pipeline_mode = #tpu.pipeline_mode<synchronous>, transform_indices = @transform_7, window_bounds = array<i64: 1, 256>}, {transform_indices = @transform_8, window_bounds = array<i64: 1>}, {transform_indices = @transform_9, window_bounds = array<i64: 8, 1>}]} {
    %c0 = arith.constant 0 : index
    %c0_0 = arith.constant 0 : index
    %0 = vector.load %arg1[%c0, %c0_0] : memref<8x69xf32, #tpu.memory_space<vmem>>, vector<8x69xf32>
    %1 = arith.truncf %0 : vector<8x69xf32> to vector<8x69xbf16>
    %c0_1 = arith.constant 0 : index
    %c0_2 = arith.constant 0 : index
    %2 = vector.load %arg2[%c0_1, %c0_2] : memref<69x256xbf16, #tpu.memory_space<vmem>>, vector<69x256xbf16>
    %cst = arith.constant dense<0.000000e+00> : vector<8x256xf32>
    %3 = tpu.matmul %1, %2, %cst {dimension_numbers = #tpu.dot_dimension_numbers<[1], [0], [0], [1], [0, 0, 1, 1], [], []>} : vector<8x69xbf16>, vector<69x256xbf16>, vector<8x256xf32> -> vector<8x256xf32>
    %c0_3 = arith.constant 0 : index
    %c0_4 = arith.constant 0 : index
    %4 = vector.load %arg3[%c0_3, %c0_4] : memref<1x256xf32, #tpu.memory_space<vmem>>, vector<1x256xf32>
    %5 = vector.broadcast %4 : vector<1x256xf32> to vector<8x256xf32>
    %6 = arith.addf %3, %5 : vector<8x256xf32>
    %cst_5 = arith.constant 0.000000e+00 : f32
    %7 = vector.broadcast %cst_5 : f32 to vector<8x256xf32>
    %8 = arith.maximumf %6, %7 : vector<8x256xf32>
    %9 = arith.truncf %8 : vector<8x256xf32> to vector<8x256xbf16>
    %c0_6 = arith.constant 0 : index
    %c0_7 = arith.constant 0 : index
    %10 = vector.load %arg4[%c0_6, %c0_7] : memref<256x256xbf16, #tpu.memory_space<vmem>>, vector<256x256xbf16>
    %cst_8 = arith.constant dense<0.000000e+00> : vector<8x256xf32>
    %11 = tpu.matmul %9, %10, %cst_8 {dimension_numbers = #tpu.dot_dimension_numbers<[1], [0], [0], [1], [0, 0, 1, 1], [], []>} : vector<8x256xbf16>, vector<256x256xbf16>, vector<8x256xf32> -> vector<8x256xf32>
    %c0_9 = arith.constant 0 : index
    %c0_10 = arith.constant 0 : index
    %12 = vector.load %arg5[%c0_9, %c0_10] : memref<1x256xf32, #tpu.memory_space<vmem>>, vector<1x256xf32>
    %13 = vector.broadcast %12 : vector<1x256xf32> to vector<8x256xf32>
    %14 = arith.addf %11, %13 : vector<8x256xf32>
    %cst_11 = arith.constant 0.000000e+00 : f32
    %15 = vector.broadcast %cst_11 : f32 to vector<8x256xf32>
    %16 = arith.maximumf %14, %15 : vector<8x256xf32>
    %17 = arith.truncf %16 : vector<8x256xf32> to vector<8x256xbf16>
    %c0_12 = arith.constant 0 : index
    %c0_13 = arith.constant 0 : index
    %18 = vector.load %arg6[%c0_12, %c0_13] : memref<256x256xbf16, #tpu.memory_space<vmem>>, vector<256x256xbf16>
    %cst_14 = arith.constant dense<0.000000e+00> : vector<8x256xf32>
    %19 = tpu.matmul %17, %18, %cst_14 {dimension_numbers = #tpu.dot_dimension_numbers<[1], [0], [0], [1], [0, 0, 1, 1], [], []>} : vector<8x256xbf16>, vector<256x256xbf16>, vector<8x256xf32> -> vector<8x256xf32>
    %c0_15 = arith.constant 0 : index
    %c0_16 = arith.constant 0 : index
    %20 = vector.load %arg7[%c0_15, %c0_16] : memref<1x256xf32, #tpu.memory_space<vmem>>, vector<1x256xf32>
    %21 = vector.broadcast %20 : vector<1x256xf32> to vector<8x256xf32>
    %22 = arith.addf %19, %21 : vector<8x256xf32>
    %cst_17 = arith.constant 0.000000e+00 : f32
    %23 = vector.broadcast %cst_17 : f32 to vector<8x256xf32>
    %24 = arith.maximumf %22, %23 : vector<8x256xf32>
    %25 = arith.addf %8, %24 : vector<8x256xf32>
    %c0_18 = arith.constant 0 : index
    %c0_19 = arith.constant 0 : index
    %26 = vector.load %arg8[%c0_18, %c0_19] : memref<1x256xf32, #tpu.memory_space<vmem>>, vector<1x256xf32>
    %27 = vector.broadcast %26 : vector<1x256xf32> to vector<8x256xf32>
    %28 = arith.mulf %25, %27 : vector<8x256xf32>
    %cst_20 = arith.constant dense<0.000000e+00> : vector<8xf32>
    %29 = vector.multi_reduction <add>, %28, %cst_20 [1] : vector<8x256xf32> to vector<8xf32>
    %30 = vector.shape_cast %29 : vector<8xf32> to vector<8x1xf32>
    %c0_21 = arith.constant 0 : index
    %31 = memref.load %arg9[%c0_21] : memref<1xf32, #tpu.memory_space<smem>>
    %32 = vector.broadcast %31 : f32 to vector<8x1xf32>
    %33 = arith.addf %30, %32 : vector<8x1xf32>
    %34 = arith.negf %33 : vector<8x1xf32>
    %35 = math.exp %34 : vector<8x1xf32>
    %cst_22 = arith.constant 1.000000e+00 : f32
    %36 = vector.broadcast %cst_22 : f32 to vector<8x1xf32>
    %37 = arith.addf %36, %35 : vector<8x1xf32>
    %38 = arith.divf %36, %37 : vector<8x1xf32>
    %c0_23 = arith.constant 0 : index
    %c0_24 = arith.constant 0 : index
    %39 = vector.load %arg10[%c0_23, %c0_24] : memref<8x1xf32, #tpu.memory_space<vmem>>, vector<8x1xf32>
    tpu.vector_store %arg10[%c0_23, %c0_24], %38 {strides = array<i32>} : memref<8x1xf32, #tpu.memory_space<vmem>>, vector<8x1xf32>,
    return
  }
  func.func @transform_0(%arg0: i32) -> (i32, i32) {
    %c0_i32 = arith.constant 0 : i32
    %c0_i32_0 = arith.constant 0 : i32
    return %arg0, %c0_i32 : i32, i32
  }
  func.func @transform_1(%arg0: i32) -> (i32, i32) {
    %c0_i32 = arith.constant 0 : i32
    %c0_i32_0 = arith.constant 0 : i32
    %c0_i32_1 = arith.constant 0 : i32
    return %c0_i32, %c0_i32_0 : i32, i32
  }
  func.func @transform_2(%arg0: i32) -> (i32, i32) {
    %c0_i32 = arith.constant 0 : i32
    %c0_i32_0 = arith.constant 0 : i32
    %c0_i32_1 = arith.constant 0 : i32
    return %c0_i32, %c0_i32_0 : i32, i32
  }
  func.func @transform_3(%arg0: i32) -> (i32, i32) {
    %c0_i32 = arith.constant 0 : i32
    %c0_i32_0 = arith.constant 0 : i32
    %c0_i32_1 = arith.constant 0 : i32
    return %c0_i32, %c0_i32_0 : i32, i32
  }
  func.func @transform_4(%arg0: i32) -> (i32, i32) {
    %c0_i32 = arith.constant 0 : i32
    %c0_i32_0 = arith.constant 0 : i32
    %c0_i32_1 = arith.constant 0 : i32
    return %c0_i32, %c0_i32_0 : i32, i32
  }
  func.func @transform_5(%arg0: i32) -> (i32, i32) {
    %c0_i32 = arith.constant 0 : i32
    %c0_i32_0 = arith.constant 0 : i32
    %c0_i32_1 = arith.constant 0 : i32
    return %c0_i32, %c0_i32_0 : i32, i32
  }
  func.func @transform_6(%arg0: i32) -> (i32, i32) {
    %c0_i32 = arith.constant 0 : i32
    %c0_i32_0 = arith.constant 0 : i32
    %c0_i32_1 = arith.constant 0 : i32
    return %c0_i32, %c0_i32_0 : i32, i32
  }
  func.func @transform_7(%arg0: i32) -> (i32, i32) {
    %c0_i32 = arith.constant 0 : i32
    %c0_i32_0 = arith.constant 0 : i32
    %c0_i32_1 = arith.constant 0 : i32
    return %c0_i32, %c0_i32_0 : i32, i32
  }
  func.func @transform_8(%arg0: i32) -> i32 {
    %c0_i32 = arith.constant 0 : i32
    %c0_i32_0 = arith.constant 0 : i32
    return %c0_i32 : i32
  }
  func.func @transform_9(%arg0: i32) -> (i32, i32) {
    %c0_i32 = arith.constant 0 : i32
    %c0_i32_0 = arith.constant 0 : i32
    return %arg0, %c0_i32 : i32, i32
  }
}

</mosaic_0001>

<llo_original>
// kernel: prediction_forward.1
$region0: #{prediction_forward.1}
  #allocation0 [shape = 'u32[]', space=smem, size = 0x4, offset = 0x4, fixed_abs, tag = 'smem constant byte address 0x4 - core index']
  #allocation1 [shape = 'u32[144,128]{1,0:T(1,128)}', space=vmem, size = 0x12000, scoped, tag = 'internal scratch']
  #allocation2 [shape = 'f32[1]{0:T(128)S(6)}', space=smem, size = 0x200, scoped, tag = 'scoped memory for prediction_forward.1']
  %s0 = inlined_call_operand.vmem [shape: f32[16,69], index: 0, kind: input, shape index: {}]
  %s1 = inlined_call_operand.vmem [shape: bf16[69,256], index: 1, kind: input, shape index: {}]
  %s2 = inlined_call_operand.vmem [shape: f32[1,256], index: 2, kind: input, shape index: {}]
  %s3 = inlined_call_operand.vmem [shape: bf16[256,256], index: 3, kind: input, shape index: {}]
  %s4 = inlined_call_operand.vmem [shape: f32[1,256], index: 4, kind: input, shape index: {}]
  %s5 = inlined_call_operand.vmem [shape: bf16[256,256], index: 5, kind: input, shape index: {}]
  %s6 = inlined_call_operand.vmem [shape: f32[1,256], index: 6, kind: input, shape index: {}]
  %s7 = inlined_call_operand.vmem [shape: f32[1,256], index: 7, kind: input, shape index: {}]
  %s8 = inlined_call_operand.<no memory space> [shape: f32[1], index: 8, kind: input, shape index: {}]
  %s9 = inlined_call_operand.vmem [shape: f32[16,1], index: 9, kind: output, shape index: {}]
  %s10 = sld [smem:[#allocation0]]
  $region69: #{prediction_forward.1} parent=0
    _
  %s12 = ssub.s32 1, %s10
  %s13 = scalar_select 0, %s12, %s10
  %14 = sst [smem:[#allocation2]] %s8
  loop: start=0, step=1, limit=4
  $region2: #{prediction_forward.1} parent=0 // loop_pre_header
    _
  $region3: #{prediction_forward.1} parent=0 // loop_header
    %s16 = sphi 0, %s20
    %p17 = scmp.ge.s32.totalorder %s16, 4
    %s26 = sphi 0, %s28
    %s29 = sphi 0, %s26
    %s30 = sphi 0, %s29
    %s46 = sphi 0, %s30
    %s50 = sphi 0, %s50
    %s52 = sphi 0, %s50
    %s53 = sphi 0, %s52
    %s67 = sphi 0, %s53
    %s71 = sphi 0, %s71
    %s73 = sphi 0, %s71
    %s74 = sphi 0, %s73
    %s88 = sphi 0, %s74
    %s92 = sphi 0, %s92
    %s94 = sphi 0, %s92
    %s95 = sphi 0, %s94
    %s109 = sphi 0, %s95
    %s113 = sphi 0, %s113
    %s115 = sphi 0, %s113
    %s116 = sphi 0, %s115
    %s130 = sphi 0, %s116
    %s134 = sphi 0, %s134
    %s136 = sphi 0, %s134
    %s137 = sphi 0, %s136
    %s151 = sphi 0, %s137
    %s155 = sphi 0, %s155
    %s157 = sphi 0, %s155
    %s158 = sphi 0, %s157
    %s172 = sphi 0, %s158
    %s176 = sphi 0, %s176
    %s178 = sphi 0, %s176
    %s179 = sphi 0, %s178
    %s193 = sphi 0, %s179
    %s197 = sphi 0, %s197
    %s199 = sphi 0, %s197
    %s200 = sphi 0, %s199
    %s214 = sphi 0, %s200
    %s220 = sphi 0, %s222
    %s223 = sphi 0, %s220
    %s224 = sphi 0, %s223
    %s240 = sphi 0, %s224
  $region4: #{prediction_forward.1} parent=0 // loop_header_branch
    %19 = sbr.rel (%p17) target = $region8
  $region5: #{prediction_forward.1} parent=0 // loop_body
    %s21 = ssub.s32 %s16, 1
    %s22 = ssub.s32 %s16, 2
    %s23 = sadd.s32 %s16, 1
    %s24 = ssub.s32 %s16, %s23
    %p25 = scmp.eq.s32.totalorder %s24, 0
    %s27 = sadd.s32 %s26, 1
    %s28 = scalar_select %p25, %s26, %s27
    %p31 = pneg %p25
    %p32 = scmp.eq.s32.totalorder %s16, 1
    %p33 = por %p31, %p32
    %p34 = scmp.ne.s32.totalorder %s26, %s29
    %p35 = scmp.eq.s32.totalorder %s16, 0
    %p36 = por %p34, %p35
    %p37 = scmp.ne.s32.totalorder %s26, %s29
    %p38 = scmp.eq.s32.totalorder %s21, 1
    %p39 = por %p37, %p38
    %p40 = scmp.ne.s32.totalorder %s29, %s30
    %p41 = scmp.eq.s32.totalorder %s21, 0
    %p42 = por %p40, %p41
    %p43 = scmp.ne.s32.totalorder %s29, %s30
    %p44 = scmp.eq.s32.totalorder %s22, 1
    %p45 = por %p43, %p44
    %p47 = scmp.ne.s32.totalorder %s30, %s46
    %p48 = scmp.eq.s32.totalorder %s22, 0
    %p49 = por %p47, %p48
    %s51 = sadd.s32 %s50, 1
    %p54 = scmp.eq.s32.totalorder %s16, 1
    %p55 = scmp.ne.s32.totalorder %s50, %s52
    %p56 = scmp.eq.s32.totalorder %s16, 0
    %p57 = por %p55, %p56
    %p58 = scmp.ne.s32.totalorder %s50, %s52
    %p59 = scmp.eq.s32.totalorder %s21, 1
    %p60 = por %p58, %p59
    %p61 = scmp.ne.s32.totalorder %s52, %s53
    %p62 = scmp.eq.s32.totalorder %s21, 0
    %p63 = por %p61, %p62
    %p64 = scmp.ne.s32.totalorder %s52, %s53
    %p65 = scmp.eq.s32.totalorder %s22, 1
    %p66 = por %p64, %p65
    %p68 = scmp.ne.s32.totalorder %s53, %s67
    %p69 = scmp.eq.s32.totalorder %s22, 0
    %p70 = por %p68, %p69
    %s72 = sadd.s32 %s71, 1
    %p75 = scmp.eq.s32.totalorder %s16, 1
    %p76 = scmp.ne.s32.totalorder %s71, %s73
    %p77 = scmp.eq.s32.totalorder %s16, 0
    %p78 = por %p76, %p77
    %p79 = scmp.ne.s32.totalorder %s71, %s73
    %p80 = scmp.eq.s32.totalorder %s21, 1
    %p81 = por %p79, %p80
    %p82 = scmp.ne.s32.totalorder %s73, %s74
    %p83 = scmp.eq.s32.totalorder %s21, 0
    %p84 = por %p82, %p83
    %p85 = scmp.ne.s32.totalorder %s73, %s74
    %p86 = scmp.eq.s32.totalorder %s22, 1
    %p87 = por %p85, %p86
    %p89 = scmp.ne.s32.totalorder %s74, %s88
    %p90 = scmp.eq.s32.totalorder %s22, 0
    %p91 = por %p89, %p90
    %s93 = sadd.s32 %s92, 1
    %p96 = scmp.eq.s32.totalorder %s16, 1
    %p97 = scmp.ne.s32.totalorder %s92, %s94
    %p98 = scmp.eq.s32.totalorder %s16, 0
    %p99 = por %p97, %p98
    %p100 = scmp.ne.s32.totalorder %s92, %s94
    %p101 = scmp.eq.s32.totalorder %s21, 1
    %p102 = por %p100, %p101
    %p103 = scmp.ne.s32.totalorder %s94, %s95
    %p104 = scmp.eq.s32.totalorder %s21, 0
    %p105 = por %p103, %p104
    %p106 = scmp.ne.s32.totalorder %s94, %s95
    %p107 = scmp.eq.s32.totalorder %s22, 1
    %p108 = por %p106, %p107
    %p110 = scmp.ne.s32.totalorder %s95, %s109
    %p111 = scmp.eq.s32.totalorder %s22, 0
    %p112 = por %p110, %p111
    %s114 = sadd.s32 %s113, 1
    %p117 = scmp.eq.s32.totalorder %s16, 1
    %p118 = scmp.ne.s32.totalorder %s113, %s115
    %p119 = scmp.eq.s32.totalorder %s16, 0
    %p120 = por %p118, %p119
    %p121 = scmp.ne.s32.totalorder %s113, %s115
    %p122 = scmp.eq.s32.totalorder %s21, 1
    %p123 = por %p121, %p122
    %p124 = scmp.ne.s32.totalorder %s115, %s116
    %p125 = scmp.eq.s32.totalorder %s21, 0
    %p126 = por %p124, %p125
    %p127 = scmp.ne.s32.totalorder %s115, %s116
    %p128 = scmp.eq.s32.totalorder %s22, 1
    %p129 = por %p127, %p128
    %p131 = scmp.ne.s32.totalorder %s116, %s130
    %p132 = scmp.eq.s32.totalorder %s22, 0
    %p133 = por %p131, %p132
    %s135 = sadd.s32 %s134, 1
    %p138 = scmp.eq.s32.totalorder %s16, 1
    %p139 = scmp.ne.s32.totalorder %s134, %s136
    %p140 = scmp.eq.s32.totalorder %s16, 0
    %p141 = por %p139, %p140
    %p142 = scmp.ne.s32.totalorder %s134, %s136
    %p143 = scmp.eq.s32.totalorder %s21, 1
    %p144 = por %p142, %p143
    %p145 = scmp.ne.s32.totalorder %s136, %s137
    %p146 = scmp.eq.s32.totalorder %s21, 0
    %p147 = por %p145, %p146
    %p148 = scmp.ne.s32.totalorder %s136, %s137
    %p149 = scmp.eq.s32.totalorder %s22, 1
    %p150 = por %p148, %p149
    %p152 = scmp.ne.s32.totalorder %s137, %s151
    %p153 = scmp.eq.s32.totalorder %s22, 0
    %p154 = por %p152, %p153
    %s156 = sadd.s32 %s155, 1
    %p159 = scmp.eq.s32.totalorder %s16, 1
    %p160 = scmp.ne.s32.totalorder %s155, %s157
    %p161 = scmp.eq.s32.totalorder %s16, 0
    %p162 = por %p160, %p161
    %p163 = scmp.ne.s32.totalorder %s155, %s157
    %p164 = scmp.eq.s32.totalorder %s21, 1
    %p165 = por %p163, %p164
    %p166 = scmp.ne.s32.totalorder %s157, %s158
    %p167 = scmp.eq.s32.totalorder %s21, 0
    %p168 = por %p166, %p167
    %p169 = scmp.ne.s32.totalorder %s157, %s158
    %p170 = scmp.eq.s32.totalorder %s22, 1
    %p171 = por %p169, %p170
    %p173 = scmp.ne.s32.totalorder %s158, %s172
    %p174 = scmp.eq.s32.totalorder %s22, 0
    %p175 = por %p173, %p174
    %s177 = sadd.s32 %s176, 1
    %p180 = scmp.eq.s32.totalorder %s16, 1
    %p181 = scmp.ne.s32.totalorder %s176, %s178
    %p182 = scmp.eq.s32.totalorder %s16, 0
    %p183 = por %p181, %p182
    %p184 = scmp.ne.s32.totalorder %s176, %s178
    %p185 = scmp.eq.s32.totalorder %s21, 1
    %p186 = por %p184, %p185
    %p187 = scmp.ne.s32.totalorder %s178, %s179
    %p188 = scmp.eq.s32.totalorder %s21, 0
    %p189 = por %p187, %p188
    %p190 = scmp.ne.s32.totalorder %s178, %s179
    %p191 = scmp.eq.s32.totalorder %s22, 1
    %p192 = por %p190, %p191
    %p194 = scmp.ne.s32.totalorder %s179, %s193
    %p195 = scmp.eq.s32.totalorder %s22, 0
    %p196 = por %p194, %p195
    %s198 = sadd.s32 %s197, 1
    %p201 = scmp.eq.s32.totalorder %s16, 1
    %p202 = scmp.ne.s32.totalorder %s197, %s199
    %p203 = scmp.eq.s32.totalorder %s16, 0
    %p204 = por %p202, %p203
    %p205 = scmp.ne.s32.totalorder %s197, %s199
    %p206 = scmp.eq.s32.totalorder %s21, 1
    %p207 = por %p205, %p206
    %p208 = scmp.ne.s32.totalorder %s199, %s200
    %p209 = scmp.eq.s32.totalorder %s21, 0
    %p210 = por %p208, %p209
    %p211 = scmp.ne.s32.totalorder %s199, %s200
    %p212 = scmp.eq.s32.totalorder %s22, 1
    %p213 = por %p211, %p212
    %p215 = scmp.ne.s32.totalorder %s200, %s214
    %p216 = scmp.eq.s32.totalorder %s22, 0
    %p217 = por %p215, %p216
    %s218 = ssub.s32 %s16, %s23
    %p219 = scmp.eq.s32.totalorder %s218, 0
    %s221 = sadd.s32 %s220, 1
    %s222 = scalar_select %p219, %s220, %s221
    %p225 = pneg %p219
    %p226 = scmp.eq.s32.totalorder %s16, 1
    %p227 = por %p225, %p226
    %p228 = scmp.ne.s32.totalorder %s220, %s223
    %p229 = scmp.eq.s32.totalorder %s16, 0
    %p230 = por %p228, %p229
    %p231 = scmp.ne.s32.totalorder %s220, %s223
    %p232 = scmp.eq.s32.totalorder %s21, 1
    %p233 = por %p231, %p232
    %p234 = scmp.ne.s32.totalorder %s223, %s224
    %p235 = scmp.eq.s32.totalorder %s21, 0
    %p236 = por %p234, %p235
    %p237 = scmp.ne.s32.totalorder %s223, %s224
    %p238 = scmp.eq.s32.totalorder %s22, 1
    %p239 = por %p237, %p238
    %p241 = scmp.ne.s32.totalorder %s224, %s240
    %p242 = scmp.eq.s32.totalorder %s22, 0
    %p243 = por %p241, %p242
    %p244 = scmp.le.s32.totalorder 1, %s16
    %p245 = scmp.lt.s32.totalorder %s16, 3
    %p246 = pnand %p244, %p245
    %p247 = pneg %p246
    // Predicated region
    $region9: #{prediction_forward.1} parent=5 // pred_check
      _
    $region10: #{prediction_forward.1} parent=5 // pred_check_branch
      %249 = sbr.rel (%p246) target = $region12
    $region11: #{prediction_forward.1} parent=5 // pred_region
      %s250 = ssub.s32 %s16, 1
      // Predicated region
      $region13: #{prediction_forward.1} parent=11 // pred_check
        %p251 = pneg %p63
      $region14: #{prediction_forward.1} parent=11 // pred_check_branch
        %253 = sbr.rel (%p251) target = $region16
      $region15: #{prediction_forward.1} parent=11 // pred_region
        _
      $region16: #{prediction_forward.1} parent=11 // pred_fallthru
        _
      // Predicated region
      $region17: #{prediction_forward.1} parent=11 // pred_check
        %p254 = pneg %p84
      $region18: #{prediction_forward.1} parent=11 // pred_check_branch
        %256 = sbr.rel (%p254) target = $region20
      $region19: #{prediction_forward.1} parent=11 // pred_region
        _
      $region20: #{prediction_forward.1} parent=11 // pred_fallthru
        _
      // Predicated region
      $region21: #{prediction_forward.1} parent=11 // pred_check
        %p257 = pneg %p105
      $region22: #{prediction_forward.1} parent=11 // pred_check_branch
        %259 = sbr.rel (%p257) target = $region24
      $region23: #{prediction_forward.1} parent=11 // pred_region
        _
      $region24: #{prediction_forward.1} parent=11 // pred_fallthru
        _
      // Predicated region
      $region25: #{prediction_forward.1} parent=11 // pred_check
        %p260 = pneg %p126
      $region26: #{prediction_forward.1} parent=11 // pred_check_branch
        %262 = sbr.rel (%p260) target = $region28
      $region27: #{prediction_forward.1} parent=11 // pred_region
        _
      $region28: #{prediction_forward.1} parent=11 // pred_fallthru
        _
      // Predicated region
      $region29: #{prediction_forward.1} parent=11 // pred_check
        %p263 = pneg %p147
      $region30: #{prediction_forward.1} parent=11 // pred_check_branch
        %265 = sbr.rel (%p263) target = $region32
      $region31: #{prediction_forward.1} parent=11 // pred_region
        _
      $region32: #{prediction_forward.1} parent=11 // pred_fallthru
        _
      // Predicated region
      $region33: #{prediction_forward.1} parent=11 // pred_check
        %p266 = pneg %p168
      $region34: #{prediction_forward.1} parent=11 // pred_check_branch
        %268 = sbr.rel (%p266) target = $region36
      $region35: #{prediction_forward.1} parent=11 // pred_region
        _
      $region36: #{prediction_forward.1} parent=11 // pred_fallthru
        _
      // Predicated region
      $region37: #{prediction_forward.1} parent=11 // pred_check
        %p269 = pneg %p189
      $region38: #{prediction_forward.1} parent=11 // pred_check_branch
        %271 = sbr.rel (%p269) target = $region40
      $region39: #{prediction_forward.1} parent=11 // pred_region
        _
      $region40: #{prediction_forward.1} parent=11 // pred_fallthru
        _
      // Predicated region
      $region41: #{prediction_forward.1} parent=11 // pred_check
        %p272 = pneg %p210
      $region42: #{prediction_forward.1} parent=11 // pred_check_branch
        %274 = sbr.rel (%p272) target = $region44
      $region43: #{prediction_forward.1} parent=11 // pred_region
        _
      $region44: #{prediction_forward.1} parent=11 // pred_fallthru
        _
    $region12: #{prediction_forward.1} parent=5 // pred_fallthru
      _
    %p275 = scmp.lt.s32.totalorder %s16, 2
    // Predicated region
    $region45: #{prediction_forward.1} parent=5 // pred_check
      %p276 = pneg %p275
    $region46: #{prediction_forward.1} parent=5 // pred_check_branch
      %278 = sbr.rel (%p276) target = $region48
    $region47: #{prediction_forward.1} parent=5 // pred_region
      // Predicated region
      $region49: #{prediction_forward.1} parent=47 // pred_check
        %p279 = pneg %p36
      $region50: #{prediction_forward.1} parent=47 // pred_check_branch
        %281 = sbr.rel (%p279) target = $region52
      $region51: #{prediction_forward.1} parent=47 // pred_region
        %p282 = scmp.lt.s32.totalorder %s16, 1
        %s283 = scalar_select %p282, %s16, 1
        %s284 = smul.addr %s283, 8
        %s285 = scalar_lea.vmem %s0, %s284
      $region52: #{prediction_forward.1} parent=47 // pred_fallthru
        _
    $region48: #{prediction_forward.1} parent=5 // pred_fallthru
      _
    %p286 = scmp.le.s32.totalorder 1, %s16
    %p287 = scmp.lt.s32.totalorder %s16, 3
    %p288 = pnand %p286, %p287
    %p289 = pneg %p288
    // Predicated region
    $region53: #{prediction_forward.1} parent=5 // pred_check
      _
    $region54: #{prediction_forward.1} parent=5 // pred_check_branch
      %291 = sbr.rel (%p288) target = $region56
    $region55: #{prediction_forward.1} parent=5 // pred_region
      %s292 = ssub.s32 %s16, 1
      %p293 = scmp.lt.s32.totalorder %s21, 1
      %s294 = scalar_select %p293, %s21, 1
      %s295 = smul.addr %s294, 8
      %s296 = scalar_lea.vmem %s0, %s295
      %p297 = pneg %p42
      %p298 = pneg %p39
      %p299 = pneg %p63
      %p300 = pneg %p60
      %p301 = pneg %p84
      %p302 = pneg %p81
      %p303 = pneg %p105
      %p304 = pneg %p102
      %p305 = pneg %p126
      %p306 = pneg %p123
      %p307 = pneg %p147
      %p308 = pneg %p144
      %p309 = pneg %p168
      %p310 = pneg %p165
      %p311 = pneg %p189
      %p312 = pneg %p186
      %p313 = pneg %p210
      %p314 = pneg %p207
      %p315 = pneg %p236
      %p316 = pneg %p233
      %p317 = scmp.lt.s32.totalorder %s21, 1
      %s318 = scalar_select %p317, %s21, 1
      %s319 = smul.addr %s318, 8
      %s320 = scalar_lea.vmem %s9, %s319
      %p321 = scmp.lt.s32.totalorder %s21, 1
      %s322 = scalar_select %p321, %s21, 1
      %s323 = smul.addr %s322, 8
      %s324 = scalar_lea.vmem %s0, %s323
      %p325 = scmp.lt.s32.totalorder %s21, 1
      %s326 = scalar_select %p325, %s21, 1
      %s327 = smul.addr %s326, 8
      %s328 = scalar_lea.vmem %s9, %s327
      %v330 = vld [vmem:[%s324] sm:$0xff]
      %v331 = vpack.c.bf16 %v330, %v330
      %v332 = vld [vmem:[%s1] sm:$0xff]
      %v333 = vld [vmem:[%s1 + $0x8] sm:$0xff]
      %v334 = vld [vmem:[%s1 + $0x10] sm:$0xff]
      %v335 = vld [vmem:[%s1 + $0x18] sm:$0xff]
      %v336 = vld [vmem:[%s1 + $0x20] sm:$0xff]
      %v337 = vld [vmem:[%s1 + $0x28] sm:$0xff]
      %v338 = vld [vmem:[%s1 + $0x30] sm:$0xff]
      %v339 = vld [vmem:[%s1 + $0x38] sm:$0xff]
      %v340 = vld [vmem:[%s1 + $0x40] sm:$0x77]
      %v341 = vld [vmem:[%s2] sm:$0x3]
      %v343 = vlaneseq
      %v344 = vshrl.u32 %v343, 7
      %v345 = vsub.s32 0, %v344
      %v346 = vrot.slane %v341, %v345
      %v347 = vlaneseq
      %v348 = vshrl.u32 %v347, 7
      %v349 = vsub.s32 1, %v348
      %v350 = vrot.slane %v341, %v349
      %v362 = vunpack.c.l.b16 %v332
      %v363 = vunpack.c.h.b16 %v332
      %v364 = vunpack.c.l.b16 %v333
      %v365 = vunpack.c.h.b16 %v333
      %v366 = vunpack.c.l.b16 %v334
      %v367 = vunpack.c.h.b16 %v334
      %v368 = vunpack.c.l.b16 %v335
      %v369 = vunpack.c.h.b16 %v335
      %v370 = vunpack.c.l.b16 %v336
      %v371 = vunpack.c.h.b16 %v336
      %v372 = vunpack.c.l.b16 %v337
      %v373 = vunpack.c.h.b16 %v337
      %v374 = vunpack.c.l.b16 %v338
      %v375 = vunpack.c.h.b16 %v338
      %v376 = vunpack.c.l.b16 %v339
      %v377 = vunpack.c.h.b16 %v339
      %v378 = vunpack.c.l.b16 %v340
      %v379 = vunpack.c.h.b16 %v340
      %v380 = vpack.c.b16 %v364, %v362
      %v381 = vpack.c.b16 %v365, %v363
      %v382 = vpack.c.b16 %v368, %v366
      %v383 = vpack.c.b16 %v369, %v367
      %v384 = vpack.c.b16 %v372, %v370
      %v385 = vpack.c.b16 %v373, %v371
      %v386 = vpack.c.b16 %v376, %v374
      %v387 = vpack.c.b16 %v377, %v375
      %v388 = vpack.c.b16 %v378, %v378
      %v389 = vpack.c.b16 %v379, %v379
      %vm398 = vcmask 564224
      %v400 = vsel %vm398, %v331, 0
      %vm402 = vcmask 1041408
      %vm403 = vcmask 1042432
      %v404 = vsel %vm402, 4294967295, 65535
      %v405 = vsel %vm403, %v404, 0
      %v407 = vand.u32 %v388, %v405
      %v410 = vand.u32 %v389, %v405
      %412 = vmatprep.subr.bf16.mxu0 %v381
      %413 = vmatpush1.bf16.msra.mxu0 %v380
      %414 = vmatprep.subr.bf16.mxu0 %v383
      %415 = vmatpush1.bf16.msra.mxu0 %v382
      %416 = vmatprep.subr.bf16.mxu0 %v385
      %417 = vmatpush1.bf16.msra.mxu0 %v384
      %418 = vmatprep.subr.bf16.mxu0 %v387
      %419 = vmatpush1.bf16.msra.mxu0 %v386
      %420 = vmatprep.subr.bf16.mxu0 %v410
      %421 = vmatpush1.bf16.msra.mxu0 %v407
      %422 = vmatprep.subr.bf16.mxu0 0
      %423 = vmatpush1.bf16.msra.mxu0 0
      %424 = vmatprep.subr.bf16.mxu0 0
      %425 = vmatpush1.bf16.msra.mxu0 0
      %426 = vmatprep.subr.bf16.mxu0 0
      %427 = vmatpush1.bf16.msra.mxu0 0
      %428 = vmatprep.subr.bf16.mxu0 0
      %429 = vmatpush1.bf16.msra.mxu0 0
      %430 = vmatprep.subr.bf16.mxu0 0
      %431 = vmatpush1.bf16.msra.mxu0 0
      %432 = vmatprep.subr.bf16.mxu0 0
      %433 = vmatpush1.bf16.msra.mxu0 0
      %434 = vmatprep.subr.bf16.mxu0 0
      %435 = vmatpush1.bf16.msra.mxu0 0
      %436 = vmatprep.subr.bf16.mxu0 0
      %437 = vmatpush1.bf16.msra.mxu0 0
      %438 = vmatprep.subr.bf16.mxu0 0
      %439 = vmatpush1.bf16.msra.mxu0 0
      %440 = vmatprep.subr.bf16.mxu0 0
      %441 = vmatpush1.bf16.msra.mxu0 0
      %442 = vmatprep.subr.bf16.mxu0 0
      %443 = vmatpush1.bf16.msra.mxu0 0
      %444 = vmatprep.mubr.bf16.mxu0 0
      %445 = vmatmul.mubr.bf16.gmra.mrb[0].mxu0 %v400
      %v446 = vpop.f32.mrb[0].mxu0
      %v447 = vadd.f32 %v346, %v446
      %v448 = vpop.f32.mrb[0].mxu0
      %v449 = vadd.f32 %v350, %v448
      %v450 = vpop.f32.mrb[0].mxu0
      %v451 = vpop.f32.mrb[0].mxu0
      %452 = vdwg.mxu0
      %v453 = vmax.f32 %v447, 0.0
      %v454 = vmax.f32 %v449, 0.0
      %v455 = vpack.c.bf16 %v453, %v453
      %v456 = vpack.c.bf16 %v454, %v454
      %v457 = vld [vmem:[%s3] sm:$0xff]
      %v458 = vld [vmem:[%s3 + $0x8] sm:$0xff]
      %v459 = vld [vmem:[%s3 + $0x10] sm:$0xff]
      %v460 = vld [vmem:[%s3 + $0x18] sm:$0xff]
      %v461 = vld [vmem:[%s3 + $0x20] sm:$0xff]
      %v462 = vld [vmem:[%s3 + $0x28] sm:$0xff]
      %v463 = vld [vmem:[%s3 + $0x30] sm:$0xff]
      %v464 = vld [vmem:[%s3 + $0x38] sm:$0xff]
      %v465 = vld [vmem:[%s3 + $0x40] sm:$0xff]
      %v466 = vld [vmem:[%s3 + $0x48] sm:$0xff]
      %v467 = vld [vmem:[%s3 + $0x50] sm:$0xff]
      %v468 = vld [vmem:[%s3 + $0x58] sm:$0xff]
      %v469 = vld [vmem:[%s3 + $0x60] sm:$0xff]
      %v470 = vld [vmem:[%s3 + $0x68] sm:$0xff]
      %v471 = vld [vmem:[%s3 + $0x70] sm:$0xff]
      %v472 = vld [vmem:[%s3 + $0x78] sm:$0xff]
      %v473 = vld [vmem:[%s3 + $0x80] sm:$0xff]
      %v474 = vld [vmem:[%s3 + $0x88] sm:$0xff]
      %v475 = vld [vmem:[%s3 + $0x90] sm:$0xff]
      %v476 = vld [vmem:[%s3 + $0x98] sm:$0xff]
      %v477 = vld [vmem:[%s3 + $0xa0] sm:$0xff]
      %v478 = vld [vmem:[%s3 + $0xa8] sm:$0xff]
      %v479 = vld [vmem:[%s3 + $0xb0] sm:$0xff]
      %v480 = vld [vmem:[%s3 + $0xb8] sm:$0xff]
      %v481 = vld [vmem:[%s3 + $0xc0] sm:$0xff]
      %v482 = vld [vmem:[%s3 + $0xc8] sm:$0xff]
      %v483 = vld [vmem:[%s3 + $0xd0] sm:$0xff]
      %v484 = vld [vmem:[%s3 + $0xd8] sm:$0xff]
      %v485 = vld [vmem:[%s3 + $0xe0] sm:$0xff]
      %v486 = vld [vmem:[%s3 + $0xe8] sm:$0xff]
      %v487 = vld [vmem:[%s3 + $0xf0] sm:$0xff]
      %v488 = vld [vmem:[%s3 + $0xf8] sm:$0xff]
      %v489 = vld [vmem:[%s4] sm:$0x3]
      %v491 = vlaneseq
      %v492 = vshrl.u32 %v491, 7
      %v493 = vsub.s32 0, %v492
      %v494 = vrot.slane %v489, %v493
      %v495 = vlaneseq
      %v496 = vshrl.u32 %v495, 7
      %v497 = vsub.s32 1, %v496
      %v498 = vrot.slane %v489, %v497
      %v533 = vunpack.c.l.b16 %v457
      %v534 = vunpack.c.h.b16 %v457
      %v535 = vunpack.c.l.b16 %v458
      %v536 = vunpack.c.h.b16 %v458
      %v537 = vunpack.c.l.b16 %v459
      %v538 = vunpack.c.h.b16 %v459
      %v539 = vunpack.c.l.b16 %v460
      %v540 = vunpack.c.h.b16 %v460
      %v541 = vunpack.c.l.b16 %v461
      %v542 = vunpack.c.h.b16 %v461
      %v543 = vunpack.c.l.b16 %v462
      %v544 = vunpack.c.h.b16 %v462
      %v545 = vunpack.c.l.b16 %v463
      %v546 = vunpack.c.h.b16 %v463
      %v547 = vunpack.c.l.b16 %v464
      %v548 = vunpack.c.h.b16 %v464
      %v549 = vunpack.c.l.b16 %v465
      %v550 = vunpack.c.h.b16 %v465
      %v551 = vunpack.c.l.b16 %v466
      %v552 = vunpack.c.h.b16 %v466
      %v553 = vunpack.c.l.b16 %v467
      %v554 = vunpack.c.h.b16 %v467
      %v555 = vunpack.c.l.b16 %v468
      %v556 = vunpack.c.h.b16 %v468
      %v557 = vunpack.c.l.b16 %v469
      %v558 = vunpack.c.h.b16 %v469
      %v559 = vunpack.c.l.b16 %v470
      %v560 = vunpack.c.h.b16 %v470
      %v561 = vunpack.c.l.b16 %v471
      %v562 = vunpack.c.h.b16 %v471
      %v563 = vunpack.c.l.b16 %v472
      %v564 = vunpack.c.h.b16 %v472
      %v565 = vunpack.c.l.b16 %v473
      %v566 = vunpack.c.h.b16 %v473
      %v567 = vunpack.c.l.b16 %v474
      %v568 = vunpack.c.h.b16 %v474
      %v569 = vunpack.c.l.b16 %v475
      %v570 = vunpack.c.h.b16 %v475
      %v571 = vunpack.c.l.b16 %v476
      %v572 = vunpack.c.h.b16 %v476
      %v573 = vunpack.c.l.b16 %v477
      %v574 = vunpack.c.h.b16 %v477
      %v575 = vunpack.c.l.b16 %v478
      %v576 = vunpack.c.h.b16 %v478
      %v577 = vunpack.c.l.b16 %v479
      %v578 = vunpack.c.h.b16 %v479
      %v579 = vunpack.c.l.b16 %v480
      %v580 = vunpack.c.h.b16 %v480
      %v581 = vunpack.c.l.b16 %v481
      %v582 = vunpack.c.h.b16 %v481
      %v583 = vunpack.c.l.b16 %v482
      %v584 = vunpack.c.h.b16 %v482
      %v585 = vunpack.c.l.b16 %v483
      %v586 = vunpack.c.h.b16 %v483
      %v587 = vunpack.c.l.b16 %v484
      %v588 = vunpack.c.h.b16 %v484
      %v589 = vunpack.c.l.b16 %v485
      %v590 = vunpack.c.h.b16 %v485
      %v591 = vunpack.c.l.b16 %v486
      %v592 = vunpack.c.h.b16 %v486
      %v593 = vunpack.c.l.b16 %v487
      %v594 = vunpack.c.h.b16 %v487
      %v595 = vunpack.c.l.b16 %v488
      %v596 = vunpack.c.h.b16 %v488
      %v597 = vpack.c.b16 %v535, %v533
      %v598 = vpack.c.b16 %v536, %v534
      %v599 = vpack.c.b16 %v539, %v537
      %v600 = vpack.c.b16 %v540, %v538
      %v601 = vpack.c.b16 %v543, %v541
      %v602 = vpack.c.b16 %v544, %v542
      %v603 = vpack.c.b16 %v547, %v545
      %v604 = vpack.c.b16 %v548, %v546
      %v605 = vpack.c.b16 %v551, %v549
      %v606 = vpack.c.b16 %v552, %v550
      %v607 = vpack.c.b16 %v555, %v553
      %v608 = vpack.c.b16 %v556, %v554
      %v609 = vpack.c.b16 %v559, %v557
      %v610 = vpack.c.b16 %v560, %v558
      %v611 = vpack.c.b16 %v563, %v561
      %v612 = vpack.c.b16 %v564, %v562
      %v613 = vpack.c.b16 %v567, %v565
      %v614 = vpack.c.b16 %v568, %v566
      %v615 = vpack.c.b16 %v571, %v569
      %v616 = vpack.c.b16 %v572, %v570
      %v617 = vpack.c.b16 %v575, %v573
      %v618 = vpack.c.b16 %v576, %v574
      %v619 = vpack.c.b16 %v579, %v577
      %v620 = vpack.c.b16 %v580, %v578
      %v621 = vpack.c.b16 %v583, %v581
      %v622 = vpack.c.b16 %v584, %v582
      %v623 = vpack.c.b16 %v587, %v585
      %v624 = vpack.c.b16 %v588, %v586
      %v625 = vpack.c.b16 %v591, %v589
      %v626 = vpack.c.b16 %v592, %v590
      %v627 = vpack.c.b16 %v595, %v593
      %v628 = vpack.c.b16 %v596, %v594
      %661 = vmatprep.subr.bf16.mxu0 %v598
      %662 = vmatpush1.bf16.msra.mxu0 %v597
      %663 = vmatprep.subr.bf16.mxu0 %v600
      %664 = vmatpush1.bf16.msra.mxu0 %v599
      %665 = vmatprep.subr.bf16.mxu0 %v602
      %666 = vmatpush1.bf16.msra.mxu0 %v601
      %667 = vmatprep.subr.bf16.mxu0 %v604
      %668 = vmatpush1.bf16.msra.mxu0 %v603
      %669 = vmatprep.subr.bf16.mxu0 %v606
      %670 = vmatpush1.bf16.msra.mxu0 %v605
      %671 = vmatprep.subr.bf16.mxu0 %v608
      %672 = vmatpush1.bf16.msra.mxu0 %v607
      %673 = vmatprep.subr.bf16.mxu0 %v610
      %674 = vmatpush1.bf16.msra.mxu0 %v609
      %675 = vmatprep.subr.bf16.mxu0 %v612
      %676 = vmatpush1.bf16.msra.mxu0 %v611
      %677 = vmatprep.subr.bf16.mxu0 %v614
      %678 = vmatpush1.bf16.msra.mxu0 %v613
      %679 = vmatprep.subr.bf16.mxu0 %v616
      %680 = vmatpush1.bf16.msra.mxu0 %v615
      %681 = vmatprep.subr.bf16.mxu0 %v618
      %682 = vmatpush1.bf16.msra.mxu0 %v617
      %683 = vmatprep.subr.bf16.mxu0 %v620
      %684 = vmatpush1.bf16.msra.mxu0 %v619
      %685 = vmatprep.subr.bf16.mxu0 %v622
      %686 = vmatpush1.bf16.msra.mxu0 %v621
      %687 = vmatprep.subr.bf16.mxu0 %v624
      %688 = vmatpush1.bf16.msra.mxu0 %v623
      %689 = vmatprep.subr.bf16.mxu0 %v626
      %690 = vmatpush1.bf16.msra.mxu0 %v625
      %691 = vmatprep.subr.bf16.mxu0 %v628
      %692 = vmatpush1.bf16.msra.mxu0 %v627
      %693 = vmatprep.mubr.bf16.mxu0 %v456
      %694 = vmatmul.mubr.bf16.gmra.mrb[0].mxu0 %v455
      %v695 = vpop.f32.mrb[0].mxu0
      %v696 = vadd.f32 %v494, %v695
      %v697 = vpop.f32.mrb[0].mxu0
      %v698 = vadd.f32 %v498, %v697
      %v699 = vpop.f32.mrb[0].mxu0
      %v700 = vpop.f32.mrb[0].mxu0
      %701 = vdwg.mxu0
      %v702 = vmax.f32 %v696, 0.0
      %v703 = vmax.f32 %v698, 0.0
      %v704 = vpack.c.bf16 %v702, %v702
      %v705 = vpack.c.bf16 %v703, %v703
      %v706 = vld [vmem:[%s5] sm:$0xff]
      %v707 = vld [vmem:[%s5 + $0x8] sm:$0xff]
      %v708 = vld [vmem:[%s5 + $0x10] sm:$0xff]
      %v709 = vld [vmem:[%s5 + $0x18] sm:$0xff]
      %v710 = vld [vmem:[%s5 + $0x20] sm:$0xff]
      %v711 = vld [vmem:[%s5 + $0x28] sm:$0xff]
      %v712 = vld [vmem:[%s5 + $0x30] sm:$0xff]
      %v713 = vld [vmem:[%s5 + $0x38] sm:$0xff]
      %v714 = vld [vmem:[%s5 + $0x40] sm:$0xff]
      %v715 = vld [vmem:[%s5 + $0x48] sm:$0xff]
      %v716 = vld [vmem:[%s5 + $0x50] sm:$0xff]
      %v717 = vld [vmem:[%s5 + $0x58] sm:$0xff]
      %v718 = vld [vmem:[%s5 + $0x60] sm:$0xff]
      %v719 = vld [vmem:[%s5 + $0x68] sm:$0xff]
      %v720 = vld [vmem:[%s5 + $0x70] sm:$0xff]
      %v721 = vld [vmem:[%s5 + $0x78] sm:$0xff]
      %v722 = vld [vmem:[%s5 + $0x80] sm:$0xff]
      %v723 = vld [vmem:[%s5 + $0x88] sm:$0xff]
      %v724 = vld [vmem:[%s5 + $0x90] sm:$0xff]
      %v725 = vld [vmem:[%s5 + $0x98] sm:$0xff]
      %v726 = vld [vmem:[%s5 + $0xa0] sm:$0xff]
      %v727 = vld [vmem:[%s5 + $0xa8] sm:$0xff]
      %v728 = vld [vmem:[%s5 + $0xb0] sm:$0xff]
      %v729 = vld [vmem:[%s5 + $0xb8] sm:$0xff]
      %v730 = vld [vmem:[%s5 + $0xc0] sm:$0xff]
      %v731 = vld [vmem:[%s5 + $0xc8] sm:$0xff]
      %v732 = vld [vmem:[%s5 + $0xd0] sm:$0xff]
      %v733 = vld [vmem:[%s5 + $0xd8] sm:$0xff]
      %v734 = vld [vmem:[%s5 + $0xe0] sm:$0xff]
      %v735 = vld [vmem:[%s5 + $0xe8] sm:$0xff]
      %v736 = vld [vmem:[%s5 + $0xf0] sm:$0xff]
      %v737 = vld [vmem:[%s5 + $0xf8] sm:$0xff]
      %v738 = vld [vmem:[%s6] sm:$0x3]
      %v740 = vlaneseq
      %v741 = vshrl.u32 %v740, 7
      %v742 = vsub.s32 0, %v741
      %v743 = vrot.slane %v738, %v742
      %v744 = vlaneseq
      %v745 = vshrl.u32 %v744, 7
      %v746 = vsub.s32 1, %v745
      %v747 = vrot.slane %v738, %v746
      %v782 = vunpack.c.l.b16 %v706
      %v783 = vunpack.c.h.b16 %v706
      %v784 = vunpack.c.l.b16 %v707
      %v785 = vunpack.c.h.b16 %v707
      %v786 = vunpack.c.l.b16 %v708
      %v787 = vunpack.c.h.b16 %v708
      %v788 = vunpack.c.l.b16 %v709
      %v789 = vunpack.c.h.b16 %v709
      %v790 = vunpack.c.l.b16 %v710
      %v791 = vunpack.c.h.b16 %v710
      %v792 = vunpack.c.l.b16 %v711
      %v793 = vunpack.c.h.b16 %v711
      %v794 = vunpack.c.l.b16 %v712
      %v795 = vunpack.c.h.b16 %v712
      %v796 = vunpack.c.l.b16 %v713
      %v797 = vunpack.c.h.b16 %v713
      %v798 = vunpack.c.l.b16 %v714
      %v799 = vunpack.c.h.b16 %v714
      %v800 = vunpack.c.l.b16 %v715
      %v801 = vunpack.c.h.b16 %v715
      %v802 = vunpack.c.l.b16 %v716
      %v803 = vunpack.c.h.b16 %v716
      %v804 = vunpack.c.l.b16 %v717
      %v805 = vunpack.c.h.b16 %v717
      %v806 = vunpack.c.l.b16 %v718
      %v807 = vunpack.c.h.b16 %v718
      %v808 = vunpack.c.l.b16 %v719
      %v809 = vunpack.c.h.b16 %v719
      %v810 = vunpack.c.l.b16 %v720
      %v811 = vunpack.c.h.b16 %v720
      %v812 = vunpack.c.l.b16 %v721
      %v813 = vunpack.c.h.b16 %v721
      %v814 = vunpack.c.l.b16 %v722
      %v815 = vunpack.c.h.b16 %v722
      %v816 = vunpack.c.l.b16 %v723
      %v817 = vunpack.c.h.b16 %v723
      %v818 = vunpack.c.l.b16 %v724
      %v819 = vunpack.c.h.b16 %v724
      %v820 = vunpack.c.l.b16 %v725
      %v821 = vunpack.c.h.b16 %v725
      %v822 = vunpack.c.l.b16 %v726
      %v823 = vunpack.c.h.b16 %v726
      %v824 = vunpack.c.l.b16 %v727
      %v825 = vunpack.c.h.b16 %v727
      %v826 = vunpack.c.l.b16 %v728
      %v827 = vunpack.c.h.b16 %v728
      %v828 = vunpack.c.l.b16 %v729
      %v829 = vunpack.c.h.b16 %v729
      %v830 = vunpack.c.l.b16 %v730
      %v831 = vunpack.c.h.b16 %v730
      %v832 = vunpack.c.l.b16 %v731
      %v833 = vunpack.c.h.b16 %v731
      %v834 = vunpack.c.l.b16 %v732
      %v835 = vunpack.c.h.b16 %v732
      %v836 = vunpack.c.l.b16 %v733
      %v837 = vunpack.c.h.b16 %v733
      %v838 = vunpack.c.l.b16 %v734
      %v839 = vunpack.c.h.b16 %v734
      %v840 = vunpack.c.l.b16 %v735
      %v841 = vunpack.c.h.b16 %v735
      %v842 = vunpack.c.l.b16 %v736
      %v843 = vunpack.c.h.b16 %v736
      %v844 = vunpack.c.l.b16 %v737
      %v845 = vunpack.c.h.b16 %v737
      %v846 = vpack.c.b16 %v784, %v782
      %v847 = vpack.c.b16 %v785, %v783
      %v848 = vpack.c.b16 %v788, %v786
      %v849 = vpack.c.b16 %v789, %v787
      %v850 = vpack.c.b16 %v792, %v790
      %v851 = vpack.c.b16 %v793, %v791
      %v852 = vpack.c.b16 %v796, %v794
      %v853 = vpack.c.b16 %v797, %v795
      %v854 = vpack.c.b16 %v800, %v798
      %v855 = vpack.c.b16 %v801, %v799
      %v856 = vpack.c.b16 %v804, %v802
      %v857 = vpack.c.b16 %v805, %v803
      %v858 = vpack.c.b16 %v808, %v806
      %v859 = vpack.c.b16 %v809, %v807
      %v860 = vpack.c.b16 %v812, %v810
      %v861 = vpack.c.b16 %v813, %v811
      %v862 = vpack.c.b16 %v816, %v814
      %v863 = vpack.c.b16 %v817, %v815
      %v864 = vpack.c.b16 %v820, %v818
      %v865 = vpack.c.b16 %v821, %v819
      %v866 = vpack.c.b16 %v824, %v822
      %v867 = vpack.c.b16 %v825, %v823
      %v868 = vpack.c.b16 %v828, %v826
      %v869 = vpack.c.b16 %v829, %v827
      %v870 = vpack.c.b16 %v832, %v830
      %v871 = vpack.c.b16 %v833, %v831
      %v872 = vpack.c.b16 %v836, %v834
      %v873 = vpack.c.b16 %v837, %v835
      %v874 = vpack.c.b16 %v840, %v838
      %v875 = vpack.c.b16 %v841, %v839
      %v876 = vpack.c.b16 %v844, %v842
      %v877 = vpack.c.b16 %v845, %v843
      %910 = vmatprep.subr.bf16.mxu0 %v847
      %911 = vmatpush1.bf16.msra.mxu0 %v846
      %912 = vmatprep.subr.bf16.mxu0 %v849
      %913 = vmatpush1.bf16.msra.mxu0 %v848
      %914 = vmatprep.subr.bf16.mxu0 %v851
      %915 = vmatpush1.bf16.msra.mxu0 %v850
      %916 = vmatprep.subr.bf16.mxu0 %v853
      %917 = vmatpush1.bf16.msra.mxu0 %v852
      %918 = vmatprep.subr.bf16.mxu0 %v855
      %919 = vmatpush1.bf16.msra.mxu0 %v854
      %920 = vmatprep.subr.bf16.mxu0 %v857
      %921 = vmatpush1.bf16.msra.mxu0 %v856
      %922 = vmatprep.subr.bf16.mxu0 %v859
      %923 = vmatpush1.bf16.msra.mxu0 %v858
      %924 = vmatprep.subr.bf16.mxu0 %v861
      %925 = vmatpush1.bf16.msra.mxu0 %v860
      %926 = vmatprep.subr.bf16.mxu0 %v863
      %927 = vmatpush1.bf16.msra.mxu0 %v862
      %928 = vmatprep.subr.bf16.mxu0 %v865
      %929 = vmatpush1.bf16.msra.mxu0 %v864
      %930 = vmatprep.subr.bf16.mxu0 %v867
      %931 = vmatpush1.bf16.msra.mxu0 %v866
      %932 = vmatprep.subr.bf16.mxu0 %v869
      %933 = vmatpush1.bf16.msra.mxu0 %v868
      %934 = vmatprep.subr.bf16.mxu0 %v871
      %935 = vmatpush1.bf16.msra.mxu0 %v870
      %936 = vmatprep.subr.bf16.mxu0 %v873
      %937 = vmatpush1.bf16.msra.mxu0 %v872
      %938 = vmatprep.subr.bf16.mxu0 %v875
      %939 = vmatpush1.bf16.msra.mxu0 %v874
      %940 = vmatprep.subr.bf16.mxu0 %v877
      %941 = vmatpush1.bf16.msra.mxu0 %v876
      %942 = vmatprep.mubr.bf16.mxu0 %v705
      %943 = vmatmul.mubr.bf16.gmra.mrb[0].mxu0 %v704
      %v944 = vpop.f32.mrb[0].mxu0
      %v945 = vadd.f32 %v743, %v944
      %v946 = vpop.f32.mrb[0].mxu0
      %v947 = vadd.f32 %v747, %v946
      %v948 = vpop.f32.mrb[0].mxu0
      %v949 = vpop.f32.mrb[0].mxu0
      %950 = vdwg.mxu0
      %v951 = vmax.f32 %v945, 0.0
      %v952 = vmax.f32 %v947, 0.0
      %v953 = vadd.f32 %v453, %v951
      %v954 = vadd.f32 %v454, %v952
      %v955 = vld [vmem:[%s7] sm:$0x3]
      %v957 = vlaneseq
      %v958 = vshrl.u32 %v957, 7
      %v959 = vsub.s32 0, %v958
      %v960 = vrot.slane %v955, %v959
      %v961 = vlaneseq
      %v962 = vshrl.u32 %v961, 7
      %v963 = vsub.s32 1, %v962
      %v964 = vrot.slane %v955, %v963
      %v967 = vmul.f32 %v953, %v960
      %v968 = vmul.f32 %v954, %v964
      %v969 = vadd.f32 %v967, %v968
      %970 = vadd.xlane.f32.xlu0 %v969
      %v971 = vpop.xlane.xlu0 %970
      %s972 = sld [smem:[#allocation2]]
      %v973 = vstv %s972
      %v974 = vadd.f32 %v971, %v973
      %v975 = vxor.u32 %v974, 2147483648
      %v976 = vmul.f32 %v975, 1.442695
      %v977 = vpow.pop %v976
      %v978 = vadd.f32 %v977, 1.0
      %v979 = vrcp.pop %v978
      %v980 = vmul.f32 1.0, %v979
      %vm981 = vcmask 7168
      %982 = vst.msk [vmem:[%s328] sm:$0xff] %vm981, %v980
      %p983 = scmp.lt.s32.totalorder %s21, 1
      %s984 = scalar_select %p983, %s21, 1
      %s985 = smul.addr %s984, 8
      %s986 = scalar_lea.vmem %s9, %s985
      // Predicated region
      $region57: #{prediction_forward.1} parent=55 // pred_check
        %p987 = pneg %p233
      $region58: #{prediction_forward.1} parent=55 // pred_check_branch
        %989 = sbr.rel (%p987) target = $region60
      $region59: #{prediction_forward.1} parent=55 // pred_region
        _
      $region60: #{prediction_forward.1} parent=55 // pred_fallthru
        _
    $region56: #{prediction_forward.1} parent=5 // pred_fallthru
      _
    %p990 = scmp.le.s32.totalorder 2, %s16
    // Predicated region
    $region61: #{prediction_forward.1} parent=5 // pred_check
      %p991 = pneg %p990
    $region62: #{prediction_forward.1} parent=5 // pred_check_branch
      %993 = sbr.rel (%p991) target = $region64
    $region63: #{prediction_forward.1} parent=5 // pred_region
      %s994 = ssub.s32 %s16, 2
      // Predicated region
      $region65: #{prediction_forward.1} parent=63 // pred_check
        %p995 = pneg %p239
      $region66: #{prediction_forward.1} parent=63 // pred_check_branch
        %997 = sbr.rel (%p995) target = $region68
      $region67: #{prediction_forward.1} parent=63 // pred_region
        %p998 = scmp.lt.s32.totalorder %s22, 1
        %s999 = scalar_select %p998, %s22, 1
        %s1000 = smul.addr %s999, 8
        %s1001 = scalar_lea.vmem %s9, %s1000
      $region68: #{prediction_forward.1} parent=63 // pred_fallthru
        _
    $region64: #{prediction_forward.1} parent=5 // pred_fallthru
      _
  $region6: #{prediction_forward.1} parent=0 // loop_footer
    %s20 = sadd.s32 1, %s16
  $region7: #{prediction_forward.1} parent=0 // loop_footer_branch
    %15 = sbr.rel target = $region3
  $region8: #{prediction_forward.1} parent=0 // loop_exit
    _

</llo_original>
